<compile_context>
chip_gen: v6e
topology: v6e:2x2x1
jax: 0.10.0
libtpu: 0.0.40
codegen_flags: <defaults>
</compile_context>

<pallas_src>
import jax
import jax.numpy as jnp
from jax.experimental import pallas as pl
from jax.experimental.pallas import tpu as pltpu


def _logreg_kernel(x_ref, w_ref, b_ref, o_ref):
    # Cast the f32 x tile to bf16 on the VPU (hidden under the streaming DMA),
    # MXU matmul with f32 accumulation: logits = x @ W + b.
    x_bf = x_ref[...].astype(jnp.bfloat16)
    logits = jnp.dot(x_bf, w_ref[...], preferred_element_type=jnp.float32)
    logits = logits + b_ref[...]  # b_ref is [1, C] -> broadcasts over batch rows
    # Softmax in f32. Row-max subtraction is mathematically identical to the
    # reference exp(x)/sum(exp(x)) but avoids overflow for large logits.
    logits = logits - jnp.max(logits, axis=1, keepdims=True)
    e = jnp.exp(logits)
    denom = jnp.sum(e, axis=1, keepdims=True)
    o_ref[...] = e / denom  # exact divide: one value per row, rows sum to 1


def logistic_regression_forward(x, w, b, *, tile_b=1024):
    """x: [B, D] f32, w: [D, C] f32, b: [C] f32 -> probs [B, C] f32."""
    B, D = x.shape
    C = w.shape[1]

    # Batch tile selection:
    #  * tiny batches: one full-extent block (second-to-last dim == full B is
    #    always a legal block shape, no sublane-multiple requirement).
    #  * otherwise: multiple of 8 sublanes, and clamped so the grid has at
    #    least 2 steps (lets v7x shard the "parallel" batch axis over its 2
    #    TensorCores; harmless on v5e/v6e).
    if B <= 16:
        tile_b = B
    else:
        two_step = ((pl.cdiv(B, 2) + 7) // 8) * 8
        tile_b = min(tile_b, two_step)
        if tile_b >= B:
            tile_b = B

    grid = (pl.cdiv(B, tile_b),)

    # Weight/bias are tiny (D*C, C); cast/reshape them once in the wrapper.
    w_bf = w.astype(jnp.bfloat16)          # [D, C], MXU-native rhs
    b_f32 = b.astype(jnp.float32)[None, :]  # [1, C]

    # Accurate VMEM budget for this tiling (documents the per-generation math;
    # at D=32, C=8, tile_b=1024 this is ~1.3 MiB — far under v7x's 64 MiB).
    vmem_est = (
        2 * tile_b * D * 4      # x tile, f32, double-buffered
        + tile_b * D * 2        # in-kernel bf16 cast of the x tile
        + D * C * 2             # W resident, bf16
        + C * 4                 # bias resident, f32
        + 2 * tile_b * C * 4    # output tile, f32, double-buffered
        + 2 * tile_b * C * 4    # logits / exp f32 temporaries
    )
    vmem_limit = int(min(max(2 * vmem_est, 4 << 20), 64 << 20))

    return pl.pallas_call(
        _logreg_kernel,
        out_shape=jax.ShapeDtypeStruct((B, C), jnp.float32),
        grid_spec=pltpu.PrefetchScalarGridSpec(
            num_scalar_prefetch=0,
            grid=grid,
            in_specs=[
                pl.BlockSpec((tile_b, D), lambda i: (i, 0)),  # x: tiled over B
                pl.BlockSpec((D, C), lambda i: (0, 0)),       # W: resident
                pl.BlockSpec((1, C), lambda i: (0, 0)),       # b: resident
            ],
            out_specs=pl.BlockSpec((tile_b, C), lambda i: (i, 0)),
        ),
        compiler_params=pltpu.CompilerParams(
            dimension_semantics=("parallel",),  # batch axis -> v7x's 2 TCs
            vmem_limit_bytes=vmem_limit,
        ),
    )(x, w_bf, b_f32)


if __name__ == "__main__":
    key = jax.random.PRNGKey(0)
    k_x, k_w, k_b = jax.random.split(key, 3)

    batch = 8
    input_dim = 32   # "features_tensor.shape[1]" stand-in
    num_classes = 8  # "len(unique_categories)" stand-in

    x = jax.random.normal(k_x, (batch, input_dim), dtype=jnp.float32)

    # nn.Linear(input_dim, num_classes): weight [C, D], bias [C], uniform(-k, k)
    # with k = 1/sqrt(input_dim). Initialize deterministically, pre-transpose.
    bound = 1.0 / jnp.sqrt(jnp.float32(input_dim))
    w_torch_layout = jax.random.uniform(
        k_w, (num_classes, input_dim), minval=-bound, maxval=bound, dtype=jnp.float32
    )
    b = jax.random.uniform(
        k_b, (num_classes,), minval=-bound, maxval=bound, dtype=jnp.float32
    )
    w = w_torch_layout.T  # [D, C]

    probs = logistic_regression_forward(x, w, b)
    probs = jax.block_until_ready(probs)
    assert probs.shape == (batch, num_classes)

    # Reference 1: same bf16 matmul inputs / f32 accum as the kernel (tight check).
    xb = x.astype(jnp.bfloat16)
    wb = w.astype(jnp.bfloat16)
    logits_bf = jnp.dot(xb, wb, preferred_element_type=jnp.float32) + b[None, :]
    e_bf = jnp.exp(logits_bf)
    ref_bf = e_bf / jnp.sum(e_bf, axis=1, keepdims=True)
    assert jnp.allclose(probs, ref_bf, atol=2e-3, rtol=2e-3)

    # Reference 2: full-f32 PyTorch-module semantics (looser, covers bf16 cast).
    logits_f32 = x @ w + b[None, :]
    ref_f32 = jnp.exp(logits_f32) / jnp.sum(jnp.exp(logits_f32), axis=1, keepdims=True)
    assert jnp.allclose(probs, ref_f32, atol=3e-2, rtol=3e-2)

    # Rows are valid probability distributions.
    assert jnp.allclose(jnp.sum(probs, axis=1), 1.0, atol=1e-5)

    # Also exercise a ragged, multi-tile batch (partial last block path).
    B2 = 300
    x2 = jax.random.normal(jax.random.PRNGKey(1), (B2, input_dim), dtype=jnp.float32)
    probs2 = jax.block_until_ready(logistic_regression_forward(x2, w, b, tile_b=128))
    logits2 = x2 @ w + b[None, :]
    ref2 = jnp.exp(logits2) / jnp.sum(jnp.exp(logits2), axis=1, keepdims=True)
    assert probs2.shape == (B2, num_classes)
    assert jnp.allclose(probs2, ref2, atol=3e-2, rtol=3e-2)
    assert jnp.allclose(jnp.sum(probs2, axis=1), 1.0, atol=1e-5)

    print("KERNEL_OK")
</pallas_src>

<mosaic_0001>
module attributes {stable_mosaic.version = 11 : i64} {
  func.func @_logreg_kernel(%arg0: i32, %arg1: memref<8x32xf32, #tpu.memory_space<vmem>>, %arg2: memref<32x8xbf16, #tpu.memory_space<vmem>>, %arg3: memref<1x8xf32, #tpu.memory_space<vmem>>, %arg4: memref<8x8xf32, #tpu.memory_space<vmem>>) attributes {dimension_semantics = [#tpu.dimension_semantics<parallel>], iteration_bounds = array<i64: 1>, scalar_prefetch = 0 : i64, scratch_operands = 0 : i64, tpu.core_type = #tpu.core_type<tc>, window_params = [{transform_indices = @transform_0, window_bounds = array<i64: 8, 32>}, {pipeline_mode = #tpu.pipeline_mode<synchronous>, transform_indices = @transform_1, window_bounds = array<i64: 32, 8>}, {pipeline_mode = #tpu.pipeline_mode<synchronous>, transform_indices = @transform_2, window_bounds = array<i64: 1, 8>}, {transform_indices = @transform_3, window_bounds = array<i64: 8, 8>}]} {
    %c0 = arith.constant 0 : index
    %c0_0 = arith.constant 0 : index
    %0 = vector.load %arg1[%c0, %c0_0] : memref<8x32xf32, #tpu.memory_space<vmem>>, vector<8x32xf32>
    %1 = arith.truncf %0 : vector<8x32xf32> to vector<8x32xbf16>
    %c0_1 = arith.constant 0 : index
    %c0_2 = arith.constant 0 : index
    %2 = vector.load %arg2[%c0_1, %c0_2] : memref<32x8xbf16, #tpu.memory_space<vmem>>, vector<32x8xbf16>
    %cst = arith.constant dense<0.000000e+00> : vector<8x8xf32>
    %3 = tpu.matmul %1, %2, %cst {dimension_numbers = #tpu.dot_dimension_numbers<[1], [0], [0], [1], [0, 0, 1, 1], [], []>} : vector<8x32xbf16>, vector<32x8xbf16>, vector<8x8xf32> -> vector<8x8xf32>
    %c0_3 = arith.constant 0 : index
    %c0_4 = arith.constant 0 : index
    %4 = vector.load %arg3[%c0_3, %c0_4] : memref<1x8xf32, #tpu.memory_space<vmem>>, vector<1x8xf32>
    %5 = vector.broadcast %4 : vector<1x8xf32> to vector<8x8xf32>
    %6 = arith.addf %3, %5 : vector<8x8xf32>
    %cst_5 = arith.constant dense<0xFF800000> : vector<8xf32>
    %7 = vector.multi_reduction <maximumf>, %6, %cst_5 [1] : vector<8x8xf32> to vector<8xf32>
    %8 = vector.shape_cast %7 : vector<8xf32> to vector<8x1xf32>
    %9 = vector.broadcast %8 : vector<8x1xf32> to vector<8x8xf32>
    %10 = arith.subf %6, %9 : vector<8x8xf32>
    %11 = math.exp %10 : vector<8x8xf32>
    %cst_6 = arith.constant dense<0.000000e+00> : vector<8xf32>
    %12 = vector.multi_reduction <add>, %11, %cst_6 [1] : vector<8x8xf32> to vector<8xf32>
    %13 = vector.shape_cast %12 : vector<8xf32> to vector<8x1xf32>
    %14 = vector.broadcast %13 : vector<8x1xf32> to vector<8x8xf32>
    %15 = arith.divf %11, %14 : vector<8x8xf32>
    %c0_7 = arith.constant 0 : index
    %c0_8 = arith.constant 0 : index
    %16 = vector.load %arg4[%c0_7, %c0_8] : memref<8x8xf32, #tpu.memory_space<vmem>>, vector<8x8xf32>
    tpu.vector_store %arg4[%c0_7, %c0_8], %15 {strides = array<i32>} : memref<8x8xf32, #tpu.memory_space<vmem>>, vector<8x8xf32>,
    return
  }
  func.func @transform_0(%arg0: i32) -> (i32, i32) {
    %c0_i32 = arith.constant 0 : i32
    %c0_i32_0 = arith.constant 0 : i32
    return %arg0, %c0_i32 : i32, i32
  }
  func.func @transform_1(%arg0: i32) -> (i32, i32) {
    %c0_i32 = arith.constant 0 : i32
    %c0_i32_0 = arith.constant 0 : i32
    %c0_i32_1 = arith.constant 0 : i32
    return %c0_i32, %c0_i32_0 : i32, i32
  }
  func.func @transform_2(%arg0: i32) -> (i32, i32) {
    %c0_i32 = arith.constant 0 : i32
    %c0_i32_0 = arith.constant 0 : i32
    %c0_i32_1 = arith.constant 0 : i32
    return %c0_i32, %c0_i32_0 : i32, i32
  }
  func.func @transform_3(%arg0: i32) -> (i32, i32) {
    %c0_i32 = arith.constant 0 : i32
    %c0_i32_0 = arith.constant 0 : i32
    return %arg0, %c0_i32 : i32, i32
  }
}

</mosaic_0001>

<llo_original>
// kernel: tpu_custom_call.1
$region0: #{tpu_custom_call.1}
  #allocation0 [shape = 'u32[]', space=smem, size = 0x4, offset = 0x4, fixed_abs, tag = 'smem constant byte address 0x4 - core index']
  #allocation1 [shape = 'u32[144,128]{1,0:T(1,128)}', space=vmem, size = 0x12000, scoped, tag = 'internal scratch']
  %s0 = inlined_call_operand.vmem [shape: f32[8,32], index: 0, kind: input, shape index: {}]
  %s1 = inlined_call_operand.vmem [shape: bf16[32,8], index: 1, kind: input, shape index: {}]
  %s2 = inlined_call_operand.vmem [shape: f32[1,8], index: 2, kind: input, shape index: {}]
  %s3 = inlined_call_operand.hbm [shape: f32[8,8], index: 3, kind: output, shape index: {}]
  %s4 = sld [smem:[#allocation0]]
  $region22: #{tpu_custom_call.1} parent=0
    _
  %s6 = ssub.s32 1, %s4
  %s7 = scalar_select 0, %s6, %s4
  $region1: #{tpu_custom_call.1} parent=0
    #allocation2 [shape = 'u8[4096]{0}', space=vmem, size = 0x1000, scoped, tag = 'output window, operand 0, single buffered']
    #allocation3 [shape = 's32[1]{0}', space=sflag, size = 0x4, scoped, tag = 'scoped memory for tpu_custom_call.1']
    %8 = vsyncpa [#allocation3], 0
    // Predicated region
    $region2: #{tpu_custom_call.1} parent=1 // pred_check
      _
    $region3: #{tpu_custom_call.1} parent=1 // pred_check_branch
      %10 = sbr.rel (0) target = $region5
    $region4: #{tpu_custom_call.1} parent=1 // pred_region
      _
    $region5: #{tpu_custom_call.1} parent=1 // pred_fallthru
      _
    // Predicated region
    $region6: #{tpu_custom_call.1} parent=1 // pred_check
      _
    $region7: #{tpu_custom_call.1} parent=1 // pred_check_branch
      %12 = sbr.rel (0) target = $region9
    $region8: #{tpu_custom_call.1} parent=1 // pred_region
      _
    $region9: #{tpu_custom_call.1} parent=1 // pred_fallthru
      _
    // Predicated region
    $region10: #{tpu_custom_call.1} parent=1 // pred_check
      _
    $region11: #{tpu_custom_call.1} parent=1 // pred_check_branch
      %14 = sbr.rel (0) target = $region13
    $region12: #{tpu_custom_call.1} parent=1 // pred_region
      _
    $region13: #{tpu_custom_call.1} parent=1 // pred_fallthru
      _
    %v16 = vld [vmem:[%s0] sm:$0xff]
    %v17 = vpack.c.bf16 %v16, %v16
    %v18 = vld [vmem:[%s1] sm:$0xf]
    %v19 = vld [vmem:[%s1 + $0x4] sm:$0xf]
    %v20 = vld [vmem:[%s1 + $0x8] sm:$0xf]
    %v21 = vld [vmem:[%s1 + $0xc] sm:$0xf]
    %v22 = vld [vmem:[%s2] sm:$0x1]
    %v24 = vlaneseq
    %v25 = vshrl.u32 %v24, 7
    %v26 = vsub.s32 0, %v25
    %v27 = vrot.slane %v22, %v26
    %v33 = vunpack.c.l.b16 %v18
    %v34 = vunpack.c.l.b16 %v19
    %v35 = vunpack.c.l.b16 %v20
    %v36 = vunpack.c.l.b16 %v21
    %v37 = vpack.c.b16 %v34, %v33
    %v38 = vpack.c.b16 %v36, %v35
    %vm41 = vcmask 261120
    %v43 = vsel %vm41, %v17, 0
    %45 = vmatprep.subr.bf16.mxu0 0
    %46 = vmatpush1.bf16.msra.mxu0 0
    %47 = vmatprep.subr.bf16.mxu0 0
    %48 = vmatpush1.bf16.msra.mxu0 0
    %49 = vmatprep.subr.bf16.mxu0 0
    %50 = vmatpush1.bf16.msra.mxu0 0
    %51 = vmatprep.subr.bf16.mxu0 0
    %52 = vmatpush1.bf16.msra.mxu0 0
    %53 = vmatprep.subr.bf16.mxu0 0
    %54 = vmatpush1.bf16.msra.mxu0 0
    %55 = vmatprep.subr.bf16.mxu0 0
    %56 = vmatpush1.bf16.msra.mxu0 0
    %57 = vmatprep.subr.bf16.mxu0 0
    %58 = vmatpush1.bf16.msra.mxu0 %v38
    %59 = vmatprep.subr.bf16.mxu0 0
    %60 = vmatpush1.bf16.msra.mxu0 %v37
    %61 = vmatprep.subr.bf16.mxu0 0
    %62 = vmatpush2.bf16.msra.mxu0 0
    %63 = vmatprep.subr.bf16.mxu0 0
    %64 = vmatpush2.bf16.msra.mxu0 0
    %65 = vmatprep.subr.bf16.mxu0 0
    %66 = vmatpush2.bf16.msra.mxu0 0
    %67 = vmatprep.subr.bf16.mxu0 0
    %68 = vmatpush2.bf16.msra.mxu0 0
    %69 = vmatprep.subr.bf16.mxu0 0
    %70 = vmatpush2.bf16.msra.mxu0 0
    %71 = vmatprep.subr.bf16.mxu0 0
    %72 = vmatpush2.bf16.msra.mxu0 0
    %73 = vmatprep.subr.bf16.mxu0 0
    %74 = vmatpush2.bf16.msra.mxu0 0
    %75 = vmatprep.subr.bf16.mxu0 0
    %76 = vmatpush2.bf16.msra.mxu0 0
    %77 = vmatprep.mubr.bf16.mxu0 0
    %78 = vmatmul.mubr.bf16.gmra.mxu0 %v43
    %v79 = vpop.f32.mrf.mxu0
    %v80 = vadd.f32 %v27, %v79
    %v81 = vpop.f32.mrf.mxu0
    %v82 = vpop.f32.mrf.mxu0
    %v83 = vpop.f32.mrf.mxu0
    %84 = vdwg.mxu0
    %vm85 = vcmask 64512
    %v86 = vsel %vm85, %v80, -inf
    %87 = vmax.xlane.f32.xlu0 %v86
    %v88 = vpop.xlane.xlu0 %87
    %v89 = vsub.f32 %v80, %v88
    %v90 = vmul.f32 %v89, 1.442695
    %v91 = vpow.pop %v90
    %v92 = vsel %vm85, %v91, 0.0
    %93 = vadd.xlane.f32.xlu0 %v92
    %v94 = vpop.xlane.xlu0 %93
    %v95 = vrcp.pop %v94
    %v96 = vmul.f32 %v91, %v95
    %97 = vst.msk [vmem:[#allocation2] sm:$0xff] %vm85, %v96
    // Predicated region
    $region14: #{tpu_custom_call.1} parent=1 // pred_check
      _
    $region15: #{tpu_custom_call.1} parent=1 // pred_check_branch
      %99 = sbr.rel (0) target = $region17
    $region16: #{tpu_custom_call.1} parent=1 // pred_region
      %s101 = ssub.s32 128, 128
      %102 = vsyncadd [#allocation3], %s101
      %s104 = sshll.u32 [#allocation2], 4
      %s105 = int_to_ptr.vmem [resolvable:$true] %s104
      %107 = dma.vmem_to_hbm [thread:$0]  %s105, 128, %s3, [#allocation3]
    $region17: #{tpu_custom_call.1} parent=1 // pred_fallthru
      _
    // Predicated region
    $region18: #{tpu_custom_call.1} parent=1 // pred_check
      _
    $region19: #{tpu_custom_call.1} parent=1 // pred_check_branch
      %109 = sbr.rel (0) target = $region21
    $region20: #{tpu_custom_call.1} parent=1 // pred_region
      %110 = dma.done [#allocation3], 128
    $region21: #{tpu_custom_call.1} parent=1 // pred_fallthru
      _
    %111 = vsyncpa [#allocation3], 1

</llo_original>
